<compile_context>
chip_gen: v7x
topology: tpu7x:2x2x1
jax: 0.10.0
libtpu: 0.0.40
codegen_flags: <defaults>
</compile_context>

<pallas_src>
import functools

import jax
import jax.numpy as jnp
from jax.experimental import pallas as pl
from jax.experimental.pallas import tpu as pltpu


def _round_up(x, m):
    return ((x + m - 1) // m) * m


# ----------------------------------------------------------------------------
# Kernel
# ----------------------------------------------------------------------------
def _make_kernel(k_pad, r2, r3, r4, rv):
    """Fused MLP kernel; packed-buffer row offsets are baked in statically."""

    def kernel(x_ref, p_ref, out_ref):
        eps = jnp.float32(1e-5)
        inv_b = jnp.float32(1.0 / x_ref.shape[0])

        # One aligned (8,128) load of all per-feature vectors.
        vec = p_ref[rv:rv + 8, :]
        g1, be1 = vec[0:1, :], vec[1:2, :]
        g2, be2 = vec[2:3, :], vec[3:4, :]
        g3, be3 = vec[4:5, :], vec[5:6, :]
        b4 = vec[6:7, :]

        def bn_relu(z, g, be):
            # Training-mode BN over the batch (biased variance), centered form,
            # folded into one per-feature scale + FMA pass over (B,128).
            mu = jnp.sum(z, axis=0, keepdims=True) * inv_b
            zc = z - mu
            var = jnp.sum(zc * zc, axis=0, keepdims=True) * inv_b
            scale = g * jax.lax.rsqrt(var + eps)
            return jnp.maximum(zc * scale + be, 0.0)

        # Layer 1: (B, k_pad) @ (k_pad, 128)   [b1 cancelled by BN]
        h = jnp.dot(x_ref[...], p_ref[0:r2, :],
                    preferred_element_type=jnp.float32)
        h = bn_relu(h, g1, be1)

        # Layer 2: (B, 128) @ (128, 128)  (lanes 64..127 zero-padded)
        h = jnp.dot(h, p_ref[r2:r2 + 128, :],
                    preferred_element_type=jnp.float32)
        h = bn_relu(h, g2, be2)

        # Layer 3: (B, 128) @ (128, 128)  (lanes 16..127 zero-padded)
        h = jnp.dot(h, p_ref[r3:r3 + 128, :],
                    preferred_element_type=jnp.float32)
        h = bn_relu(h, g3, be3)

        # Layer 4 (no BN/ReLU): lane-dense padded output + bias.
        y = jnp.dot(h, p_ref[r4:r4 + 128, :],
                    preferred_element_type=jnp.float32)
        out_ref[...] = y + b4

    return kernel


# ----------------------------------------------------------------------------
# Parameter packing (host side, done once)
# ----------------------------------------------------------------------------
def pack_params(params, in_features, out_features):
    """Pack all weights (transposed to (fan_in, fan_out), zero-padded to 128
    lanes / 8-aligned rows) plus all BN/bias vectors into ONE (rows,128) f32
    buffer."""
    assert out_features <= 128, "output layer packed into a single 128-lane tile"
    k_pad = _round_up(in_features, 8)
    r2 = k_pad          # start of W2.T block (128,128)
    r3 = r2 + 128       # start of W3.T block (128,128)
    r4 = r3 + 128       # start of W4.T block (128,128)
    rv = r4 + 128       # start of the 8-row vector block
    rows = rv + 8

    P = jnp.zeros((rows, 128), jnp.float32)
    P = P.at[0:in_features, 0:128].set(params["w1"].T)          # (in, 128)
    P = P.at[r2:r2 + 128, 0:64].set(params["w2"].T)             # (128, 64)
    P = P.at[r3:r3 + 64, 0:16].set(params["w3"].T)              # (64, 16)
    P = P.at[r4:r4 + 16, 0:out_features].set(params["w4"].T)    # (16, out)

    # BN/bias vectors.  Padded lanes stay 0 so padded features come out
    # exactly 0 through BN+ReLU.  b1/b2/b3 intentionally NOT packed
    # (cancelled by training-mode BN mean subtraction).
    P = P.at[rv + 0, 0:128].set(params["g1"].reshape(-1))
    P = P.at[rv + 1, 0:128].set(params["be1"].reshape(-1))
    P = P.at[rv + 2, 0:64].set(params["g2"].reshape(-1))
    P = P.at[rv + 3, 0:64].set(params["be2"].reshape(-1))
    P = P.at[rv + 4, 0:16].set(params["g3"].reshape(-1))
    P = P.at[rv + 5, 0:16].set(params["be3"].reshape(-1))
    P = P.at[rv + 6, 0:out_features].set(params["b4"].reshape(-1))

    meta = {
        "in_features": in_features, "out_features": out_features,
        "k_pad": k_pad, "r2": r2, "r3": r3, "r4": r4, "rv": rv, "rows": rows,
    }
    return P, meta


# ----------------------------------------------------------------------------
# Forward builder: one jitted executable (pallas_call + fused output slice)
# ----------------------------------------------------------------------------
def build_forward(meta):
    in_f = meta["in_features"]
    out_f = meta["out_features"]
    k_pad = meta["k_pad"]
    rows = meta["rows"]

    kernel = _make_kernel(k_pad, meta["r2"], meta["r3"], meta["r4"], meta["rv"])
    vmem_spec = pl.BlockSpec(memory_space=pltpu.MemorySpace.VMEM)

    @jax.jit
    def forward(x, P):
        B = x.shape[0]
        x = x.astype(jnp.float32)
        if k_pad != in_f:  # sublane-align layer-1 K (no-op when in_f % 8 == 0)
            x = jnp.pad(x, ((0, 0), (0, k_pad - in_f)))

        cost = pl.CostEstimate(
            flops=2 * B * (k_pad * 128 + 3 * 128 * 128) + 12 * B * 128,
            transcendentals=3 * 128,
            bytes_accessed=4 * (B * k_pad + rows * 128 + B * 128),
        )
        y_pad = pl.pallas_call(
            kernel,
            out_shape=jax.ShapeDtypeStruct((B, 128), jnp.float32),
            in_specs=[vmem_spec, vmem_spec],
            out_specs=vmem_spec,
            cost_estimate=cost,
        )(x, P)
        # Lane-padding strip stays fused inside this same jit.
        return y_pad[:, :out_f]

    return forward


# ----------------------------------------------------------------------------
# Params init (PyTorch-style) and pure-JAX reference
# ----------------------------------------------------------------------------
def init_params(key, in_features, out_features):
    sizes = [(128, in_features), (64, 128), (16, 64), (out_features, 16)]
    params = {}
    for i, (fo, fi) in enumerate(sizes, start=1):
        key, kw, kb = jax.random.split(key, 3)
        bound = 1.0 / (fi ** 0.5)
        params[f"w{i}"] = jax.random.uniform(kw, (fo, fi), jnp.float32, -bound, bound)
        params[f"b{i}"] = jax.random.uniform(kb, (fo,), jnp.float32, -bound, bound)
        if i < 4:  # BatchNorm1d params for the first three layers
            params[f"g{i}"] = jnp.ones((fo,), jnp.float32)
            params[f"be{i}"] = jnp.zeros((fo,), jnp.float32)
    return params


def _reference(x, p):
    """Pure-JAX reference with the full (un-optimized) math, incl. b1/b2/b3."""
    eps = 1e-5

    def layer(h, w, b, g, be):
        z = h @ w.T + b
        mu = jnp.mean(z, axis=0, keepdims=True)
        var = jnp.mean((z - mu) ** 2, axis=0, keepdims=True)
        zn = (z - mu) / jnp.sqrt(var + eps)
        return jnp.maximum(zn * g + be, 0.0)

    h = layer(x, p["w1"], p["b1"], p["g1"], p["be1"])
    h = layer(h, p["w2"], p["b2"], p["g2"], p["be2"])
    h = layer(h, p["w3"], p["b3"], p["g3"], p["be3"])
    return h @ p["w4"].T + p["b4"]


if __name__ == "__main__":
    key = jax.random.PRNGKey(0)
    in_features, out_features, batch = 32, 4, 8

    kx, kp = jax.random.split(key)
    x = jax.random.normal(kx, (batch, in_features), jnp.float32)
    params = init_params(kp, in_features, out_features)

    P, meta = pack_params(params, in_features, out_features)
    forward = build_forward(meta)

    y = forward(x, P)
    jax.block_until_ready(y)

    y_ref = _reference(x, params)
    assert y.shape == (batch, out_features)
    assert jnp.allclose(y, y_ref, atol=1e-4, rtol=1e-4), "mismatch vs reference"
    print("KERNEL_OK")
</pallas_src>

<mosaic_0001>
module attributes {stable_mosaic.version = 11 : i64} {
  func.func @kernel(%arg0: memref<8x32xf32, #tpu.memory_space<vmem>>, %arg1: memref<424x128xf32, #tpu.memory_space<vmem>>, %arg2: memref<8x128xf32, #tpu.memory_space<vmem>>) attributes {dimension_semantics = [], scalar_prefetch = 0 : i64, scratch_operands = 0 : i64, tpu.core_type = #tpu.core_type<tc>} {
    %c416 = arith.constant 416 : index
    %c0 = arith.constant 0 : index
    %0 = vector.load %arg1[%c416, %c0] : memref<424x128xf32, #tpu.memory_space<vmem>>, vector<8x128xf32>
    %1 = vector.extract_strided_slice %0 {offsets = [0, 0], sizes = [1, 128], strides = [1, 1]} : vector<8x128xf32> to vector<1x128xf32>
    %2 = vector.extract_strided_slice %0 {offsets = [1, 0], sizes = [1, 128], strides = [1, 1]} : vector<8x128xf32> to vector<1x128xf32>
    %3 = vector.extract_strided_slice %0 {offsets = [2, 0], sizes = [1, 128], strides = [1, 1]} : vector<8x128xf32> to vector<1x128xf32>
    %4 = vector.extract_strided_slice %0 {offsets = [3, 0], sizes = [1, 128], strides = [1, 1]} : vector<8x128xf32> to vector<1x128xf32>
    %5 = vector.extract_strided_slice %0 {offsets = [4, 0], sizes = [1, 128], strides = [1, 1]} : vector<8x128xf32> to vector<1x128xf32>
    %6 = vector.extract_strided_slice %0 {offsets = [5, 0], sizes = [1, 128], strides = [1, 1]} : vector<8x128xf32> to vector<1x128xf32>
    %7 = vector.extract_strided_slice %0 {offsets = [6, 0], sizes = [1, 128], strides = [1, 1]} : vector<8x128xf32> to vector<1x128xf32>
    %c0_0 = arith.constant 0 : index
    %c0_1 = arith.constant 0 : index
    %8 = vector.load %arg0[%c0_0, %c0_1] : memref<8x32xf32, #tpu.memory_space<vmem>>, vector<8x32xf32>
    %c0_2 = arith.constant 0 : index
    %c0_3 = arith.constant 0 : index
    %9 = vector.load %arg1[%c0_2, %c0_3] : memref<424x128xf32, #tpu.memory_space<vmem>>, vector<32x128xf32>
    %cst = arith.constant dense<0.000000e+00> : vector<8x128xf32>
    %10 = tpu.matmul %8, %9, %cst {dimension_numbers = #tpu.dot_dimension_numbers<[1], [0], [0], [1], [0, 0, 1, 1], [], []>} : vector<8x32xf32>, vector<32x128xf32>, vector<8x128xf32> -> vector<8x128xf32>
    %cst_4 = arith.constant dense<0.000000e+00> : vector<128xf32>
    %11 = vector.multi_reduction <add>, %10, %cst_4 [0] : vector<8x128xf32> to vector<128xf32>
    %12 = vector.shape_cast %11 : vector<128xf32> to vector<1x128xf32>
    %cst_5 = arith.constant 1.250000e-01 : f32
    %13 = vector.broadcast %cst_5 : f32 to vector<1x128xf32>
    %14 = arith.mulf %12, %13 : vector<1x128xf32>
    %15 = vector.broadcast %14 : vector<1x128xf32> to vector<8x128xf32>
    %16 = arith.subf %10, %15 : vector<8x128xf32>
    %17 = arith.mulf %16, %16 : vector<8x128xf32>
    %cst_6 = arith.constant dense<0.000000e+00> : vector<128xf32>
    %18 = vector.multi_reduction <add>, %17, %cst_6 [0] : vector<8x128xf32> to vector<128xf32>
    %19 = vector.shape_cast %18 : vector<128xf32> to vector<1x128xf32>
    %cst_7 = arith.constant 1.250000e-01 : f32
    %20 = vector.broadcast %cst_7 : f32 to vector<1x128xf32>
    %21 = arith.mulf %19, %20 : vector<1x128xf32>
    %cst_8 = arith.constant 9.99999974E-6 : f32
    %22 = vector.broadcast %cst_8 : f32 to vector<1x128xf32>
    %23 = arith.addf %21, %22 : vector<1x128xf32>
    %24 = math.rsqrt %23 : vector<1x128xf32>
    %25 = arith.mulf %1, %24 : vector<1x128xf32>
    %26 = vector.broadcast %25 : vector<1x128xf32> to vector<8x128xf32>
    %27 = arith.mulf %16, %26 : vector<8x128xf32>
    %28 = vector.broadcast %2 : vector<1x128xf32> to vector<8x128xf32>
    %29 = arith.addf %27, %28 : vector<8x128xf32>
    %cst_9 = arith.constant 0.000000e+00 : f32
    %30 = vector.broadcast %cst_9 : f32 to vector<8x128xf32>
    %31 = arith.maximumf %29, %30 : vector<8x128xf32>
    %c32 = arith.constant 32 : index
    %c0_10 = arith.constant 0 : index
    %32 = vector.load %arg1[%c32, %c0_10] : memref<424x128xf32, #tpu.memory_space<vmem>>, vector<128x128xf32>
    %cst_11 = arith.constant dense<0.000000e+00> : vector<8x128xf32>
    %33 = tpu.matmul %31, %32, %cst_11 {dimension_numbers = #tpu.dot_dimension_numbers<[1], [0], [0], [1], [0, 0, 1, 1], [], []>} : vector<8x128xf32>, vector<128x128xf32>, vector<8x128xf32> -> vector<8x128xf32>
    %cst_12 = arith.constant dense<0.000000e+00> : vector<128xf32>
    %34 = vector.multi_reduction <add>, %33, %cst_12 [0] : vector<8x128xf32> to vector<128xf32>
    %35 = vector.shape_cast %34 : vector<128xf32> to vector<1x128xf32>
    %cst_13 = arith.constant 1.250000e-01 : f32
    %36 = vector.broadcast %cst_13 : f32 to vector<1x128xf32>
    %37 = arith.mulf %35, %36 : vector<1x128xf32>
    %38 = vector.broadcast %37 : vector<1x128xf32> to vector<8x128xf32>
    %39 = arith.subf %33, %38 : vector<8x128xf32>
    %40 = arith.mulf %39, %39 : vector<8x128xf32>
    %cst_14 = arith.constant dense<0.000000e+00> : vector<128xf32>
    %41 = vector.multi_reduction <add>, %40, %cst_14 [0] : vector<8x128xf32> to vector<128xf32>
    %42 = vector.shape_cast %41 : vector<128xf32> to vector<1x128xf32>
    %cst_15 = arith.constant 1.250000e-01 : f32
    %43 = vector.broadcast %cst_15 : f32 to vector<1x128xf32>
    %44 = arith.mulf %42, %43 : vector<1x128xf32>
    %cst_16 = arith.constant 9.99999974E-6 : f32
    %45 = vector.broadcast %cst_16 : f32 to vector<1x128xf32>
    %46 = arith.addf %44, %45 : vector<1x128xf32>
    %47 = math.rsqrt %46 : vector<1x128xf32>
    %48 = arith.mulf %3, %47 : vector<1x128xf32>
    %49 = vector.broadcast %48 : vector<1x128xf32> to vector<8x128xf32>
    %50 = arith.mulf %39, %49 : vector<8x128xf32>
    %51 = vector.broadcast %4 : vector<1x128xf32> to vector<8x128xf32>
    %52 = arith.addf %50, %51 : vector<8x128xf32>
    %cst_17 = arith.constant 0.000000e+00 : f32
    %53 = vector.broadcast %cst_17 : f32 to vector<8x128xf32>
    %54 = arith.maximumf %52, %53 : vector<8x128xf32>
    %c160 = arith.constant 160 : index
    %c0_18 = arith.constant 0 : index
    %55 = vector.load %arg1[%c160, %c0_18] : memref<424x128xf32, #tpu.memory_space<vmem>>, vector<128x128xf32>
    %cst_19 = arith.constant dense<0.000000e+00> : vector<8x128xf32>
    %56 = tpu.matmul %54, %55, %cst_19 {dimension_numbers = #tpu.dot_dimension_numbers<[1], [0], [0], [1], [0, 0, 1, 1], [], []>} : vector<8x128xf32>, vector<128x128xf32>, vector<8x128xf32> -> vector<8x128xf32>
    %cst_20 = arith.constant dense<0.000000e+00> : vector<128xf32>
    %57 = vector.multi_reduction <add>, %56, %cst_20 [0] : vector<8x128xf32> to vector<128xf32>
    %58 = vector.shape_cast %57 : vector<128xf32> to vector<1x128xf32>
    %cst_21 = arith.constant 1.250000e-01 : f32
    %59 = vector.broadcast %cst_21 : f32 to vector<1x128xf32>
    %60 = arith.mulf %58, %59 : vector<1x128xf32>
    %61 = vector.broadcast %60 : vector<1x128xf32> to vector<8x128xf32>
    %62 = arith.subf %56, %61 : vector<8x128xf32>
    %63 = arith.mulf %62, %62 : vector<8x128xf32>
    %cst_22 = arith.constant dense<0.000000e+00> : vector<128xf32>
    %64 = vector.multi_reduction <add>, %63, %cst_22 [0] : vector<8x128xf32> to vector<128xf32>
    %65 = vector.shape_cast %64 : vector<128xf32> to vector<1x128xf32>
    %cst_23 = arith.constant 1.250000e-01 : f32
    %66 = vector.broadcast %cst_23 : f32 to vector<1x128xf32>
    %67 = arith.mulf %65, %66 : vector<1x128xf32>
    %cst_24 = arith.constant 9.99999974E-6 : f32
    %68 = vector.broadcast %cst_24 : f32 to vector<1x128xf32>
    %69 = arith.addf %67, %68 : vector<1x128xf32>
    %70 = math.rsqrt %69 : vector<1x128xf32>
    %71 = arith.mulf %5, %70 : vector<1x128xf32>
    %72 = vector.broadcast %71 : vector<1x128xf32> to vector<8x128xf32>
    %73 = arith.mulf %62, %72 : vector<8x128xf32>
    %74 = vector.broadcast %6 : vector<1x128xf32> to vector<8x128xf32>
    %75 = arith.addf %73, %74 : vector<8x128xf32>
    %cst_25 = arith.constant 0.000000e+00 : f32
    %76 = vector.broadcast %cst_25 : f32 to vector<8x128xf32>
    %77 = arith.maximumf %75, %76 : vector<8x128xf32>
    %c288 = arith.constant 288 : index
    %c0_26 = arith.constant 0 : index
    %78 = vector.load %arg1[%c288, %c0_26] : memref<424x128xf32, #tpu.memory_space<vmem>>, vector<128x128xf32>
    %cst_27 = arith.constant dense<0.000000e+00> : vector<8x128xf32>
    %79 = tpu.matmul %77, %78, %cst_27 {dimension_numbers = #tpu.dot_dimension_numbers<[1], [0], [0], [1], [0, 0, 1, 1], [], []>} : vector<8x128xf32>, vector<128x128xf32>, vector<8x128xf32> -> vector<8x128xf32>
    %80 = vector.broadcast %7 : vector<1x128xf32> to vector<8x128xf32>
    %81 = arith.addf %79, %80 : vector<8x128xf32>
    %c0_28 = arith.constant 0 : index
    %c0_29 = arith.constant 0 : index
    %82 = vector.load %arg2[%c0_28, %c0_29] : memref<8x128xf32, #tpu.memory_space<vmem>>, vector<8x128xf32>
    tpu.vector_store %arg2[%c0_28, %c0_29], %81 {strides = array<i32>} : memref<8x128xf32, #tpu.memory_space<vmem>>, vector<8x128xf32>,
    return
  }
}

</mosaic_0001>

<llo_original>
// kernel: forward.1
$region0: #{forward.1}
  #allocation0 [shape = 'u32[]', space=smem, size = 0x4, offset = 0x4, fixed_abs, tag = 'smem constant byte address 0x4 - core index']
  #allocation1 [shape = 'u32[144,128]{1,0:T(1,128)}', space=vmem, size = 0x12000, scoped, tag = 'internal scratch']
  %s0 = inlined_call_operand.hbm [shape: f32[8,32], index: 0, kind: input, shape index: {}]
  %s1 = inlined_call_operand.hbm [shape: f32[424,128], index: 1, kind: input, shape index: {}]
  %s2 = inlined_call_operand.vmem [shape: f32[8,128], index: 2, kind: output, shape index: {}]
  %s3 = sld [smem:[#allocation0]]
  $region26: #{forward.1} parent=0
    _
  %s5 = ssub.s32 1, %s3
  %s6 = scalar_select 0, %s5, %s3
  $region1: #{forward.1} parent=0
    #allocation2 [shape = 'u8[4096]{0}', space=vmem, size = 0x1000, scoped, tag = 'input window, operand 0, single buffered']
    #allocation3 [shape = 's32[1]{0}', space=sflag, size = 0x4, scoped, tag = 'scoped memory for forward.1']
    #allocation4 [shape = 'u8[217088]{0}', space=vmem, size = 0x35000, scoped, tag = 'input window, operand 1, single buffered']
    #allocation5 [shape = 's32[1]{0}', space=sflag, size = 0x4, scoped, tag = 'scoped memory for forward.1']
    %7 = vsyncpa [#allocation3], 0
    %8 = vsyncpa [#allocation5], 0
    // Predicated region
    $region2: #{forward.1} parent=1 // pred_check
      _
    $region3: #{forward.1} parent=1 // pred_check_branch
      %10 = sbr.rel (0) target = $region5
    $region4: #{forward.1} parent=1 // pred_region
      %s12 = ssub.s32 128, 128
      %13 = vsyncadd [#allocation3], %s12
      %s15 = sshll.u32 [#allocation2], 4
      %s16 = int_to_ptr.vmem [resolvable:$true] %s15
      %18 = dma.hbm_to_vmem [thread:$0]  %s0, 128, %s16, [#allocation3]
    $region5: #{forward.1} parent=1 // pred_fallthru
      _
    // Predicated region
    $region6: #{forward.1} parent=1 // pred_check
      _
    $region7: #{forward.1} parent=1 // pred_check_branch
      %20 = sbr.rel (0) target = $region9
    $region8: #{forward.1} parent=1 // pred_region
      %s22 = ssub.s32 6784, 6784
      %23 = vsyncadd [#allocation5], %s22
      %s24 = sshll.u32 [#allocation4], 4
      %s25 = int_to_ptr.vmem [resolvable:$true] %s24
      %30 = dma.hbm_to_vmem [thread:$0]  %s1, 6784, %s25, [#allocation5], 128, 128, 8
    $region9: #{forward.1} parent=1 // pred_fallthru
      _
    // Predicated region
    $region10: #{forward.1} parent=1 // pred_check
      _
    $region11: #{forward.1} parent=1 // pred_check_branch
      %32 = sbr.rel (0) target = $region13
    $region12: #{forward.1} parent=1 // pred_region
      %33 = dma.done [#allocation3], 128
    $region13: #{forward.1} parent=1 // pred_fallthru
      _
    // Predicated region
    $region14: #{forward.1} parent=1 // pred_check
      _
    $region15: #{forward.1} parent=1 // pred_check_branch
      %35 = sbr.rel (0) target = $region17
    $region16: #{forward.1} parent=1 // pred_region
      %36 = dma.done [#allocation5], 6784
    $region17: #{forward.1} parent=1 // pred_fallthru
      _
    %v37 = vld [vmem:[#allocation4 + $0x1a0] sm:$0xff]
    %v38 = vld [vmem:[#allocation2] sm:$0xff]
    %v39 = vld [vmem:[#allocation4] sm:$0xff]
    %v40 = vld [vmem:[#allocation4 + $0x8] sm:$0xff]
    %v41 = vld [vmem:[#allocation4 + $0x10] sm:$0xff]
    %v42 = vld [vmem:[#allocation4 + $0x18] sm:$0xff]
    %vm43 = vcmask 261120
    %v45 = vsel %vm43, %v38, 0
    %47 = vmatprep.subr.mxu0 0.0
    %48 = vmatpush1.msra.mxu0 %v39
    %49 = vmatprep.subr.mxu0 0.0
    %50 = vmatpush1.msra.mxu0 %v40
    %51 = vmatprep.subr.mxu0 0.0
    %52 = vmatpush1.msra.mxu0 %v41
    %53 = vmatprep.subr.mxu0 0.0
    %54 = vmatpush1.msra.mxu0 %v42
    %55 = vmatprep.subr.mxu0 0.0
    %56 = vmatpush1.msra.mxu0 0.0
    %57 = vmatprep.subr.mxu0 0.0
    %58 = vmatpush1.msra.mxu0 0.0
    %59 = vmatprep.subr.mxu0 0.0
    %60 = vmatpush1.msra.mxu0 0.0
    %61 = vmatprep.subr.mxu0 0.0
    %62 = vmatpush1.msra.mxu0 0.0
    %63 = vmatprep.subr.mxu0 0.0
    %64 = vmatpush1.msra.mxu0 0.0
    %65 = vmatprep.subr.mxu0 0.0
    %66 = vmatpush1.msra.mxu0 0.0
    %67 = vmatprep.subr.mxu0 0.0
    %68 = vmatpush1.msra.mxu0 0.0
    %69 = vmatprep.subr.mxu0 0.0
    %70 = vmatpush1.msra.mxu0 0.0
    %71 = vmatprep.subr.mxu0 0.0
    %72 = vmatpush1.msra.mxu0 0.0
    %73 = vmatprep.subr.mxu0 0.0
    %74 = vmatpush1.msra.mxu0 0.0
    %75 = vmatprep.subr.mxu0 0.0
    %76 = vmatpush1.msra.mxu0 0.0
    %77 = vmatprep.subr.mxu0 0.0
    %78 = vmatpush1.msra.mxu0 0.0
    %79 = vmatprep.subr.mxu0 0.0
    %80 = vmatpush1.msra.mxu0 0.0
    %81 = vmatprep.subr.mxu0 0.0
    %82 = vmatpush1.msra.mxu0 0.0
    %83 = vmatprep.subr.mxu0 0.0
    %84 = vmatpush1.msra.mxu0 0.0
    %85 = vmatprep.subr.mxu0 0.0
    %86 = vmatpush1.msra.mxu0 0.0
    %87 = vmatprep.subr.mxu0 0.0
    %88 = vmatpush1.msra.mxu0 0.0
    %89 = vmatprep.subr.mxu0 0.0
    %90 = vmatpush1.msra.mxu0 0.0
    %91 = vmatprep.subr.mxu0 0.0
    %92 = vmatpush1.msra.mxu0 0.0
    %93 = vmatprep.subr.mxu0 0.0
    %94 = vmatpush1.msra.mxu0 0.0
    %95 = vmatprep.subr.mxu0 0.0
    %96 = vmatpush1.msra.mxu0 0.0
    %97 = vmatprep.subr.mxu0 0.0
    %98 = vmatpush1.msra.mxu0 0.0
    %99 = vmatprep.subr.mxu0 0.0
    %100 = vmatpush1.msra.mxu0 0.0
    %101 = vmatprep.subr.mxu0 0.0
    %102 = vmatpush1.msra.mxu0 0.0
    %103 = vmatprep.subr.mxu0 0.0
    %104 = vmatpush1.msra.mxu0 0.0
    %105 = vmatprep.subr.mxu0 0.0
    %106 = vmatpush1.msra.mxu0 0.0
    %107 = vmatprep.subr.mxu0 0.0
    %108 = vmatpush1.msra.mxu0 0.0
    %109 = vmatprep.subr.mxu0 0.0
    %110 = vmatpush1.msra.mxu0 0.0
    %111 = vmatprep.mubr.f32.mxu0 0.0
    %112 = vmatmul.mubr.f32.gmra.mrb[0].mxu0 %v45
    %v113 = vpop.f32.mrb[0].mxu0
    %v114 = vadd.f32 0.0, %v113
    %v115 = vpop.f32.mrb[0].mxu0
    %116 = vdwg.mxu0
    %v117 = vrot.slane %v114, 4
    %v118 = vadd.f32 %v114, %v117
    %v119 = vrot.slane %v118, 2
    %v120 = vadd.f32 %v118, %v119
    %v121 = vrot.slane %v120, 1
    %v122 = vadd.f32 %v120, %v121
    %v123 = vmul.f32 %v122, 0.125
    %v124 = vsub.f32 %v114, %v123
    %v125 = vmul.f32 %v124, %v124
    %v126 = vrot.slane %v125, 4
    %v127 = vadd.f32 %v125, %v126
    %v128 = vrot.slane %v127, 2
    %v129 = vadd.f32 %v127, %v128
    %v130 = vrot.slane %v129, 1
    %v131 = vadd.f32 %v129, %v130
    %v132 = vmul.f32 %v131, 0.125
    %v133 = vadd.f32 %v132, 1e-05
    %v134 = vrsqrt.pop %v133
    %v135 = vmul.f32 %v37, %v134
    %v136 = vlaneseq
    %v137 = vshrl.u32 %v136, 7
    %v138 = vsub.s32 0, %v137
    %v139 = vrot.slane %v135, %v138
    %v140 = vmul.f32 %v124, %v139
    %v141 = vlaneseq
    %v142 = vshrl.u32 %v141, 7
    %v143 = vsub.s32 1, %v142
    %v144 = vrot.slane %v37, %v143
    %v145 = vadd.f32 %v140, %v144
    %v146 = vmax.f32 %v145, 0.0
    %v147 = vld [vmem:[#allocation4 + $0x20] sm:$0xff]
    %v148 = vld [vmem:[#allocation4 + $0x28] sm:$0xff]
    %v149 = vld [vmem:[#allocation4 + $0x30] sm:$0xff]
    %v150 = vld [vmem:[#allocation4 + $0x38] sm:$0xff]
    %v151 = vld [vmem:[#allocation4 + $0x40] sm:$0xff]
    %v152 = vld [vmem:[#allocation4 + $0x48] sm:$0xff]
    %v153 = vld [vmem:[#allocation4 + $0x50] sm:$0xff]
    %v154 = vld [vmem:[#allocation4 + $0x58] sm:$0xff]
    %v155 = vld [vmem:[#allocation4 + $0x60] sm:$0xff]
    %v156 = vld [vmem:[#allocation4 + $0x68] sm:$0xff]
    %v157 = vld [vmem:[#allocation4 + $0x70] sm:$0xff]
    %v158 = vld [vmem:[#allocation4 + $0x78] sm:$0xff]
    %v159 = vld [vmem:[#allocation4 + $0x80] sm:$0xff]
    %v160 = vld [vmem:[#allocation4 + $0x88] sm:$0xff]
    %v161 = vld [vmem:[#allocation4 + $0x90] sm:$0xff]
    %v162 = vld [vmem:[#allocation4 + $0x98] sm:$0xff]
    %163 = vmatprep.subr.mxu0 0.0
    %164 = vmatpush1.msra.mxu0 %v147
    %165 = vmatprep.subr.mxu0 0.0
    %166 = vmatpush1.msra.mxu0 %v148
    %167 = vmatprep.subr.mxu0 0.0
    %168 = vmatpush1.msra.mxu0 %v149
    %169 = vmatprep.subr.mxu0 0.0
    %170 = vmatpush1.msra.mxu0 %v150
    %171 = vmatprep.subr.mxu0 0.0
    %172 = vmatpush1.msra.mxu0 %v151
    %173 = vmatprep.subr.mxu0 0.0
    %174 = vmatpush1.msra.mxu0 %v152
    %175 = vmatprep.subr.mxu0 0.0
    %176 = vmatpush1.msra.mxu0 %v153
    %177 = vmatprep.subr.mxu0 0.0
    %178 = vmatpush1.msra.mxu0 %v154
    %179 = vmatprep.subr.mxu0 0.0
    %180 = vmatpush1.msra.mxu0 %v155
    %181 = vmatprep.subr.mxu0 0.0
    %182 = vmatpush1.msra.mxu0 %v156
    %183 = vmatprep.subr.mxu0 0.0
    %184 = vmatpush1.msra.mxu0 %v157
    %185 = vmatprep.subr.mxu0 0.0
    %186 = vmatpush1.msra.mxu0 %v158
    %187 = vmatprep.subr.mxu0 0.0
    %188 = vmatpush1.msra.mxu0 %v159
    %189 = vmatprep.subr.mxu0 0.0
    %190 = vmatpush1.msra.mxu0 %v160
    %191 = vmatprep.subr.mxu0 0.0
    %192 = vmatpush1.msra.mxu0 %v161
    %193 = vmatprep.subr.mxu0 0.0
    %194 = vmatpush1.msra.mxu0 %v162
    %195 = vmatprep.subr.mxu0 0.0
    %196 = vmatpush1.msra.mxu0 0.0
    %197 = vmatprep.subr.mxu0 0.0
    %198 = vmatpush1.msra.mxu0 0.0
    %199 = vmatprep.subr.mxu0 0.0
    %200 = vmatpush1.msra.mxu0 0.0
    %201 = vmatprep.subr.mxu0 0.0
    %202 = vmatpush1.msra.mxu0 0.0
    %203 = vmatprep.subr.mxu0 0.0
    %204 = vmatpush1.msra.mxu0 0.0
    %205 = vmatprep.subr.mxu0 0.0
    %206 = vmatpush1.msra.mxu0 0.0
    %207 = vmatprep.subr.mxu0 0.0
    %208 = vmatpush1.msra.mxu0 0.0
    %209 = vmatprep.subr.mxu0 0.0
    %210 = vmatpush1.msra.mxu0 0.0
    %211 = vmatprep.subr.mxu0 0.0
    %212 = vmatpush1.msra.mxu0 0.0
    %213 = vmatprep.subr.mxu0 0.0
    %214 = vmatpush1.msra.mxu0 0.0
    %215 = vmatprep.subr.mxu0 0.0
    %216 = vmatpush1.msra.mxu0 0.0
    %217 = vmatprep.subr.mxu0 0.0
    %218 = vmatpush1.msra.mxu0 0.0
    %219 = vmatprep.subr.mxu0 0.0
    %220 = vmatpush1.msra.mxu0 0.0
    %221 = vmatprep.subr.mxu0 0.0
    %222 = vmatpush1.msra.mxu0 0.0
    %223 = vmatprep.subr.mxu0 0.0
    %224 = vmatpush1.msra.mxu0 0.0
    %225 = vmatprep.subr.mxu0 0.0
    %226 = vmatpush1.msra.mxu0 0.0
    %227 = vmatprep.mubr.f32.mxu0 0.0
    %228 = vmatmul.mubr.f32.gmra.mrb[0].mxu0 %v146
    %v229 = vpop.f32.mrb[0].mxu0
    %v230 = vadd.f32 0.0, %v229
    %v231 = vpop.f32.mrb[0].mxu0
    %232 = vdwg.mxu0
    %v233 = vrot.slane %v230, 4
    %v234 = vadd.f32 %v230, %v233
    %v235 = vrot.slane %v234, 2
    %v236 = vadd.f32 %v234, %v235
    %v237 = vrot.slane %v236, 1
    %v238 = vadd.f32 %v236, %v237
    %v239 = vmul.f32 %v238, 0.125
    %v240 = vsub.f32 %v230, %v239
    %v241 = vmul.f32 %v240, %v240
    %v242 = vrot.slane %v241, 4
    %v243 = vadd.f32 %v241, %v242
    %v244 = vrot.slane %v243, 2
    %v245 = vadd.f32 %v243, %v244
    %v246 = vrot.slane %v245, 1
    %v247 = vadd.f32 %v245, %v246
    %v248 = vmul.f32 %v247, 0.125
    %v249 = vadd.f32 %v248, 1e-05
    %v250 = vrsqrt.pop %v249
    %v251 = vmul.f32 %v37, %v250
    %v252 = vlaneseq
    %v253 = vshrl.u32 %v252, 7
    %v254 = vsub.s32 2, %v253
    %v255 = vrot.slane %v251, %v254
    %v256 = vmul.f32 %v240, %v255
    %v257 = vlaneseq
    %v258 = vshrl.u32 %v257, 7
    %v259 = vsub.s32 3, %v258
    %v260 = vrot.slane %v37, %v259
    %v261 = vadd.f32 %v256, %v260
    %v262 = vmax.f32 %v261, 0.0
    %v263 = vld [vmem:[#allocation4 + $0xa0] sm:$0xff]
    %v264 = vld [vmem:[#allocation4 + $0xa8] sm:$0xff]
    %v265 = vld [vmem:[#allocation4 + $0xb0] sm:$0xff]
    %v266 = vld [vmem:[#allocation4 + $0xb8] sm:$0xff]
    %v267 = vld [vmem:[#allocation4 + $0xc0] sm:$0xff]
    %v268 = vld [vmem:[#allocation4 + $0xc8] sm:$0xff]
    %v269 = vld [vmem:[#allocation4 + $0xd0] sm:$0xff]
    %v270 = vld [vmem:[#allocation4 + $0xd8] sm:$0xff]
    %v271 = vld [vmem:[#allocation4 + $0xe0] sm:$0xff]
    %v272 = vld [vmem:[#allocation4 + $0xe8] sm:$0xff]
    %v273 = vld [vmem:[#allocation4 + $0xf0] sm:$0xff]
    %v274 = vld [vmem:[#allocation4 + $0xf8] sm:$0xff]
    %v275 = vld [vmem:[#allocation4 + $0x100] sm:$0xff]
    %v276 = vld [vmem:[#allocation4 + $0x108] sm:$0xff]
    %v277 = vld [vmem:[#allocation4 + $0x110] sm:$0xff]
    %v278 = vld [vmem:[#allocation4 + $0x118] sm:$0xff]
    %279 = vmatprep.subr.mxu0 0.0
    %280 = vmatpush1.msra.mxu0 %v263
    %281 = vmatprep.subr.mxu0 0.0
    %282 = vmatpush1.msra.mxu0 %v264
    %283 = vmatprep.subr.mxu0 0.0
    %284 = vmatpush1.msra.mxu0 %v265
    %285 = vmatprep.subr.mxu0 0.0
    %286 = vmatpush1.msra.mxu0 %v266
    %287 = vmatprep.subr.mxu0 0.0
    %288 = vmatpush1.msra.mxu0 %v267
    %289 = vmatprep.subr.mxu0 0.0
    %290 = vmatpush1.msra.mxu0 %v268
    %291 = vmatprep.subr.mxu0 0.0
    %292 = vmatpush1.msra.mxu0 %v269
    %293 = vmatprep.subr.mxu0 0.0
    %294 = vmatpush1.msra.mxu0 %v270
    %295 = vmatprep.subr.mxu0 0.0
    %296 = vmatpush1.msra.mxu0 %v271
    %297 = vmatprep.subr.mxu0 0.0
    %298 = vmatpush1.msra.mxu0 %v272
    %299 = vmatprep.subr.mxu0 0.0
    %300 = vmatpush1.msra.mxu0 %v273
    %301 = vmatprep.subr.mxu0 0.0
    %302 = vmatpush1.msra.mxu0 %v274
    %303 = vmatprep.subr.mxu0 0.0
    %304 = vmatpush1.msra.mxu0 %v275
    %305 = vmatprep.subr.mxu0 0.0
    %306 = vmatpush1.msra.mxu0 %v276
    %307 = vmatprep.subr.mxu0 0.0
    %308 = vmatpush1.msra.mxu0 %v277
    %309 = vmatprep.subr.mxu0 0.0
    %310 = vmatpush1.msra.mxu0 %v278
    %311 = vmatprep.subr.mxu0 0.0
    %312 = vmatpush1.msra.mxu0 0.0
    %313 = vmatprep.subr.mxu0 0.0
    %314 = vmatpush1.msra.mxu0 0.0
    %315 = vmatprep.subr.mxu0 0.0
    %316 = vmatpush1.msra.mxu0 0.0
    %317 = vmatprep.subr.mxu0 0.0
    %318 = vmatpush1.msra.mxu0 0.0
    %319 = vmatprep.subr.mxu0 0.0
    %320 = vmatpush1.msra.mxu0 0.0
    %321 = vmatprep.subr.mxu0 0.0
    %322 = vmatpush1.msra.mxu0 0.0
    %323 = vmatprep.subr.mxu0 0.0
    %324 = vmatpush1.msra.mxu0 0.0
    %325 = vmatprep.subr.mxu0 0.0
    %326 = vmatpush1.msra.mxu0 0.0
    %327 = vmatprep.subr.mxu0 0.0
    %328 = vmatpush1.msra.mxu0 0.0
    %329 = vmatprep.subr.mxu0 0.0
    %330 = vmatpush1.msra.mxu0 0.0
    %331 = vmatprep.subr.mxu0 0.0
    %332 = vmatpush1.msra.mxu0 0.0
    %333 = vmatprep.subr.mxu0 0.0
    %334 = vmatpush1.msra.mxu0 0.0
    %335 = vmatprep.subr.mxu0 0.0
    %336 = vmatpush1.msra.mxu0 0.0
    %337 = vmatprep.subr.mxu0 0.0
    %338 = vmatpush1.msra.mxu0 0.0
    %339 = vmatprep.subr.mxu0 0.0
    %340 = vmatpush1.msra.mxu0 0.0
    %341 = vmatprep.subr.mxu0 0.0
    %342 = vmatpush1.msra.mxu0 0.0
    %343 = vmatprep.mubr.f32.mxu0 0.0
    %344 = vmatmul.mubr.f32.gmra.mrb[0].mxu0 %v262
    %v345 = vpop.f32.mrb[0].mxu0
    %v346 = vadd.f32 0.0, %v345
    %v347 = vpop.f32.mrb[0].mxu0
    %348 = vdwg.mxu0
    %v349 = vrot.slane %v346, 4
    %v350 = vadd.f32 %v346, %v349
    %v351 = vrot.slane %v350, 2
    %v352 = vadd.f32 %v350, %v351
    %v353 = vrot.slane %v352, 1
    %v354 = vadd.f32 %v352, %v353
    %v355 = vmul.f32 %v354, 0.125
    %v356 = vsub.f32 %v346, %v355
    %v357 = vmul.f32 %v356, %v356
    %v358 = vrot.slane %v357, 4
    %v359 = vadd.f32 %v357, %v358
    %v360 = vrot.slane %v359, 2
    %v361 = vadd.f32 %v359, %v360
    %v362 = vrot.slane %v361, 1
    %v363 = vadd.f32 %v361, %v362
    %v364 = vmul.f32 %v363, 0.125
    %v365 = vadd.f32 %v364, 1e-05
    %v366 = vrsqrt.pop %v365
    %v367 = vmul.f32 %v37, %v366
    %v368 = vlaneseq
    %v369 = vshrl.u32 %v368, 7
    %v370 = vsub.s32 4, %v369
    %v371 = vrot.slane %v367, %v370
    %v372 = vmul.f32 %v356, %v371
    %v373 = vlaneseq
    %v374 = vshrl.u32 %v373, 7
    %v375 = vsub.s32 5, %v374
    %v376 = vrot.slane %v37, %v375
    %v377 = vadd.f32 %v372, %v376
    %v378 = vmax.f32 %v377, 0.0
    %v379 = vld [vmem:[#allocation4 + $0x120] sm:$0xff]
    %v380 = vld [vmem:[#allocation4 + $0x128] sm:$0xff]
    %v381 = vld [vmem:[#allocation4 + $0x130] sm:$0xff]
    %v382 = vld [vmem:[#allocation4 + $0x138] sm:$0xff]
    %v383 = vld [vmem:[#allocation4 + $0x140] sm:$0xff]
    %v384 = vld [vmem:[#allocation4 + $0x148] sm:$0xff]
    %v385 = vld [vmem:[#allocation4 + $0x150] sm:$0xff]
    %v386 = vld [vmem:[#allocation4 + $0x158] sm:$0xff]
    %v387 = vld [vmem:[#allocation4 + $0x160] sm:$0xff]
    %v388 = vld [vmem:[#allocation4 + $0x168] sm:$0xff]
    %v389 = vld [vmem:[#allocation4 + $0x170] sm:$0xff]
    %v390 = vld [vmem:[#allocation4 + $0x178] sm:$0xff]
    %v391 = vld [vmem:[#allocation4 + $0x180] sm:$0xff]
    %v392 = vld [vmem:[#allocation4 + $0x188] sm:$0xff]
    %v393 = vld [vmem:[#allocation4 + $0x190] sm:$0xff]
    %v394 = vld [vmem:[#allocation4 + $0x198] sm:$0xff]
    %v395 = vlaneseq
    %v396 = vshrl.u32 %v395, 7
    %v397 = vsub.s32 6, %v396
    %v398 = vrot.slane %v37, %v397
    %399 = vmatprep.subr.mxu0 0.0
    %400 = vmatpush1.msra.mxu0 %v379
    %401 = vmatprep.subr.mxu0 0.0
    %402 = vmatpush1.msra.mxu0 %v380
    %403 = vmatprep.subr.mxu0 0.0
    %404 = vmatpush1.msra.mxu0 %v381
    %405 = vmatprep.subr.mxu0 0.0
    %406 = vmatpush1.msra.mxu0 %v382
    %407 = vmatprep.subr.mxu0 0.0
    %408 = vmatpush1.msra.mxu0 %v383
    %409 = vmatprep.subr.mxu0 0.0
    %410 = vmatpush1.msra.mxu0 %v384
    %411 = vmatprep.subr.mxu0 0.0
    %412 = vmatpush1.msra.mxu0 %v385
    %413 = vmatprep.subr.mxu0 0.0
    %414 = vmatpush1.msra.mxu0 %v386
    %415 = vmatprep.subr.mxu0 0.0
    %416 = vmatpush1.msra.mxu0 %v387
    %417 = vmatprep.subr.mxu0 0.0
    %418 = vmatpush1.msra.mxu0 %v388
    %419 = vmatprep.subr.mxu0 0.0
    %420 = vmatpush1.msra.mxu0 %v389
    %421 = vmatprep.subr.mxu0 0.0
    %422 = vmatpush1.msra.mxu0 %v390
    %423 = vmatprep.subr.mxu0 0.0
    %424 = vmatpush1.msra.mxu0 %v391
    %425 = vmatprep.subr.mxu0 0.0
    %426 = vmatpush1.msra.mxu0 %v392
    %427 = vmatprep.subr.mxu0 0.0
    %428 = vmatpush1.msra.mxu0 %v393
    %429 = vmatprep.subr.mxu0 0.0
    %430 = vmatpush1.msra.mxu0 %v394
    %431 = vmatprep.subr.mxu0 0.0
    %432 = vmatpush1.msra.mxu0 0.0
    %433 = vmatprep.subr.mxu0 0.0
    %434 = vmatpush1.msra.mxu0 0.0
    %435 = vmatprep.subr.mxu0 0.0
    %436 = vmatpush1.msra.mxu0 0.0
    %437 = vmatprep.subr.mxu0 0.0
    %438 = vmatpush1.msra.mxu0 0.0
    %439 = vmatprep.subr.mxu0 0.0
    %440 = vmatpush1.msra.mxu0 0.0
    %441 = vmatprep.subr.mxu0 0.0
    %442 = vmatpush1.msra.mxu0 0.0
    %443 = vmatprep.subr.mxu0 0.0
    %444 = vmatpush1.msra.mxu0 0.0
    %445 = vmatprep.subr.mxu0 0.0
    %446 = vmatpush1.msra.mxu0 0.0
    %447 = vmatprep.subr.mxu0 0.0
    %448 = vmatpush1.msra.mxu0 0.0
    %449 = vmatprep.subr.mxu0 0.0
    %450 = vmatpush1.msra.mxu0 0.0
    %451 = vmatprep.subr.mxu0 0.0
    %452 = vmatpush1.msra.mxu0 0.0
    %453 = vmatprep.subr.mxu0 0.0
    %454 = vmatpush1.msra.mxu0 0.0
    %455 = vmatprep.subr.mxu0 0.0
    %456 = vmatpush1.msra.mxu0 0.0
    %457 = vmatprep.subr.mxu0 0.0
    %458 = vmatpush1.msra.mxu0 0.0
    %459 = vmatprep.subr.mxu0 0.0
    %460 = vmatpush1.msra.mxu0 0.0
    %461 = vmatprep.subr.mxu0 0.0
    %462 = vmatpush1.msra.mxu0 0.0
    %463 = vmatprep.mubr.f32.mxu0 0.0
    %464 = vmatmul.mubr.f32.gmra.mrb[0].mxu0 %v378
    %v465 = vpop.f32.mrb[0].mxu0
    %v466 = vadd.f32 %v398, %v465
    %v467 = vpop.f32.mrb[0].mxu0
    %468 = vdwg.mxu0
    %469 = vst [vmem:[%s2] sm:$0xff] %v466
    // Predicated region
    $region18: #{forward.1} parent=1 // pred_check
      _
    $region19: #{forward.1} parent=1 // pred_check_branch
      %471 = sbr.rel (0) target = $region21
    $region20: #{forward.1} parent=1 // pred_region
      _
    $region21: #{forward.1} parent=1 // pred_fallthru
      _
    // Predicated region
    $region22: #{forward.1} parent=1 // pred_check
      _
    $region23: #{forward.1} parent=1 // pred_check_branch
      %473 = sbr.rel (0) target = $region25
    $region24: #{forward.1} parent=1 // pred_region
      _
    $region25: #{forward.1} parent=1 // pred_fallthru
      _
    %474 = vsyncpa [#allocation3], 1
    %475 = vsyncpa [#allocation5], 1

</llo_original>
